<compile_context>
chip_gen: v5e
topology: v5e:2x2
jax: 0.10.0
libtpu: 0.0.40
codegen_flags: <defaults>
</compile_context>

<pallas_src>
import math

import jax
import jax.numpy as jnp
from jax.experimental import pallas as pl
from jax.experimental.pallas import tpu as pltpu

_LANE = 128      # lane width of a vreg / MXU tile
_SUBLANE = 8     # f32 sublane tile


def _round_up(n, m):
    return ((n + m - 1) // m) * m


def _cdiv(a, b):
    return -(-a // b)


def _pick_tile(dim, tile_max, granule):
    """Pick a tile <= tile_max (multiple of granule) that divides the padded
    dim with minimal padding waste. Returns (tile, padded_dim)."""
    dim_p = _round_up(max(dim, granule), granule)
    tile_max = max(granule, _round_up(min(tile_max, dim_p), granule))
    n = _cdiv(dim_p, tile_max)
    tile = _round_up(_cdiv(dim_p, n), granule)
    return tile, n * tile


def _pad2d(a, shape, dtype=None):
    """Zero-pad a 2-D array up to `shape` (top-left aligned), optional cast."""
    dtype = a.dtype if dtype is None else jnp.dtype(dtype)
    if a.shape == tuple(shape) and a.dtype == dtype:
        return a
    out = jnp.zeros(shape, dtype)
    return out.at[: a.shape[0], : a.shape[1]].set(a.astype(dtype))


def _default_vmem_limit():
    # Leave headroom vs. physical VMEM (v7x: 64 MiB, v5e/v6e: 128 MiB); raise
    # above the small scoped defaults.
    try:
        cap = int(pltpu.get_tpu_info().vmem_capacity_bytes)
        return min((cap * 3) // 4, 100 * 1024 * 1024)
    except Exception:
        return 48 * 1024 * 1024   # safe on every generation (< v7x physical)


def mlp_kernel(x_ref, wd_ref, bd_ref, wu_ref, bu_ref, h_ref, y_ref, h_acc):
    # Grid: i = batch tile ("parallel"), j = hidden tile (reduction for y),
    #       k = input-feature tile (reduction for h, innermost).
    j = pl.program_id(1)
    k = pl.program_id(2)
    nk = pl.num_programs(2)

    @pl.when(k == 0)
    def _zero_acc():
        h_acc[...] = jnp.zeros_like(h_acc)

    # Down-projection partial sum on the MXU, f32 accumulation.
    h_acc[...] += jnp.dot(x_ref[...], wd_ref[...],
                          preferred_element_type=jnp.float32)

    @pl.when(k == nk - 1)
    def _finalize_hidden_tile():
        # Bias + ReLU in f32, then store the activated tile (== self.activated).
        h = jnp.maximum(h_acc[...] + bd_ref[...], 0.0)        # [TB, TH]
        h_ref[...] = h.astype(h_ref.dtype)

        # Up-projection (out_features == 1): broadcast-multiply + lane reduce
        # (VPU + XLU) against the [1, TH] w_up row — no zero-padded [H, 128]
        # weight stream, no N=1 MXU matmul. Uses the f32 h, so y is exact
        # regardless of h_ref's storage dtype.
        y_part = jnp.sum(h * wu_ref[...], axis=-1, keepdims=True)   # [TB, 1]

        @pl.when(j == 0)
        def _init_y():
            y_ref[...] = bu_ref[...] + y_part        # add up-bias once

        @pl.when(j > 0)
        def _acc_y():
            y_ref[...] = y_ref[...] + y_part


def prepare_params(w_down, b_down, w_up, b_up, *, tile_h_max=512,
                   tile_k_max=512, compute_dtype=jnp.float32):
    """Pad / lay out the weights ONCE (outside the per-step hot path).

    w_down: [Din, H] (transposed vs torch nn.Linear.weight), b_down: [H]/[1,H],
    w_up: [H, 1] (or [H]), b_up: scalar-like.
    compute_dtype: dtype fed to the MXU for x / w_down (bfloat16 recommended on
    v6e/v7x for ~4x matmul throughput and half the weight DMA; accumulation is
    f32 either way).
    """
    Din, H = w_down.shape
    tile_k, Din_p = _pick_tile(Din, tile_k_max, _LANE)
    tile_h, H_p = _pick_tile(H, tile_h_max, _LANE)

    wd_p = _pad2d(w_down, (Din_p, H_p), compute_dtype)
    bd_p = _pad2d(jnp.asarray(b_down, jnp.float32).reshape(1, H), (1, H_p))
    wu_p = _pad2d(jnp.asarray(w_up, jnp.float32).reshape(1, H), (1, H_p))
    bu_p = jnp.asarray(b_up, jnp.float32).reshape(1, 1)

    return dict(wd=wd_p, bd=bd_p, wu=wu_p, bu=bu_p,
                Din=Din, H=H, Din_p=Din_p, H_p=H_p,
                tile_k=tile_k, tile_h=tile_h,
                compute_dtype=jnp.dtype(compute_dtype))


def mlp_forward(x, params, *, tile_b_max=1024, min_batch_tiles=1,
                h_dtype=jnp.bfloat16, vmem_limit_bytes=None, interpret=False):
    """x: [B, Din]. Returns (h_activated [B, H] in h_dtype, y [B, 1] f32).

    tile_b_max: largest batch tile (bigger => fewer w_down re-streams).
    min_batch_tiles: set to 2 on v7x so the "parallel" batch axis feeds both
        TensorCores even at moderate batch sizes.
    h_dtype: storage dtype of the activated tensor (bf16 halves the dominant
        B x H writeback; y is computed from f32 internally so it is unaffected).
    """
    B, Din = x.shape
    assert Din == params["Din"], "x feature dim does not match prepared params"
    Din_p, H_p = params["Din_p"], params["H_p"]
    tile_k, tile_h = params["tile_k"], params["tile_h"]
    H = params["H"]
    compute_dtype = params["compute_dtype"]

    # Batch tiling: maximize tile_b, optionally split for megacore.
    eff_tile_b_max = tile_b_max
    if min_batch_tiles > 1:
        split = _round_up(_cdiv(_round_up(B, _SUBLANE), min_batch_tiles), _SUBLANE)
        eff_tile_b_max = min(eff_tile_b_max, max(_SUBLANE, split))
    tile_b, B_p = _pick_tile(B, eff_tile_b_max, _SUBLANE)

    x_p = _pad2d(x, (B_p, Din_p), compute_dtype)

    grid = (B_p // tile_b, H_p // tile_h, Din_p // tile_k)
    n_b = grid[0]

    if vmem_limit_bytes is None:
        vmem_limit_bytes = _default_vmem_limit()

    w_isz = jnp.dtype(compute_dtype).itemsize
    h_isz = jnp.dtype(h_dtype).itemsize
    flops = 2 * B_p * Din_p * H_p + 4 * B_p * H_p
    bytes_accessed = (
        w_isz * B_p * Din_p                 # x read once
        + n_b * w_isz * Din_p * H_p         # w_down re-streamed per batch tile
        + n_b * 4 * 2 * H_p                 # b_down + w_up row per batch tile
        + h_isz * B_p * H_p                 # activated writeback
        + 4 * B_p                           # y writeback
    )

    h_pad, y_pad = pl.pallas_call(
        mlp_kernel,
        out_shape=(
            jax.ShapeDtypeStruct((B_p, H_p), h_dtype),
            jax.ShapeDtypeStruct((B_p, 1), jnp.float32),
        ),
        grid=grid,
        in_specs=[
            pl.BlockSpec((tile_b, tile_k), lambda i, j, k: (i, k)),   # x
            pl.BlockSpec((tile_k, tile_h), lambda i, j, k: (k, j)),   # w_down
            pl.BlockSpec((1, tile_h), lambda i, j, k: (0, j)),        # b_down
            pl.BlockSpec((1, tile_h), lambda i, j, k: (0, j)),        # w_up row
            pl.BlockSpec((1, 1), lambda i, j, k: (0, 0)),             # b_up
        ],
        out_specs=(
            pl.BlockSpec((tile_b, tile_h), lambda i, j, k: (i, j)),   # h (resident over k)
            pl.BlockSpec((tile_b, 1), lambda i, j, k: (i, 0)),        # y (resident over j, k)
        ),
        scratch_shapes=[pltpu.VMEM((tile_b, tile_h), jnp.float32)],   # h accumulator
        compiler_params=pltpu.CompilerParams(
            dimension_semantics=("parallel", "arbitrary", "arbitrary"),
            vmem_limit_bytes=int(vmem_limit_bytes),
        ),
        cost_estimate=pl.CostEstimate(
            flops=int(flops), transcendentals=0,
            bytes_accessed=int(bytes_accessed)),
        interpret=interpret,
    )(x_p, params["wd"], params["bd"], params["wu"], params["bu"])

    return h_pad[:B, :H], y_pad[:B, :]


def init_params(key, dim_input, dim_hidden):
    k1, k2, k3, k4 = jax.random.split(key, 4)
    # Match the PyTorch init stds. Stored transposed ([in, out]) vs nn.Linear.
    std_dw = 4.0 / math.sqrt(dim_hidden * dim_input)
    std_db = 4.0 / math.sqrt(dim_hidden)
    std_uw = 4.0 / math.sqrt(dim_hidden)
    std_ub = 4.0 / math.sqrt(dim_input)
    w_down = std_dw * jax.random.normal(k1, (dim_input, dim_hidden), jnp.float32)
    b_down = std_db * jax.random.normal(k2, (1, dim_hidden), jnp.float32)
    w_up = std_uw * jax.random.normal(k3, (dim_hidden, 1), jnp.float32)
    b_up = std_ub * jax.random.normal(k4, (1, 1), jnp.float32)
    return w_down, b_down, w_up, b_up


if __name__ == "__main__":
    # ---- small shapes matching the module's forward (x: [batch, dim_input]) --
    dim_input, dim_hidden, batch = 16, 32, 8
    key = jax.random.PRNGKey(0)
    key_x, key_p = jax.random.split(key)
    x = jax.random.normal(key_x, (batch, dim_input), jnp.float32)
    w_down, b_down, w_up, b_up = init_params(key_p, dim_input, dim_hidden)

    params = prepare_params(w_down, b_down, w_up, b_up)
    h_act, y = mlp_forward(x, params)          # h stored in bf16, y exact f32
    jax.block_until_ready((h_act, y))

    # Pure-JAX reference (forward semantics of the PyTorch MLP).
    h_ref = jnp.maximum(x @ w_down + b_down, 0.0)
    y_ref = h_ref @ w_up + b_up
    assert h_act.shape == (batch, dim_hidden) and y.shape == (batch, 1)
    assert jnp.allclose(h_act.astype(jnp.float32), h_ref, atol=1e-2, rtol=1e-2)
    assert jnp.allclose(y, y_ref, atol=1e-4, rtol=1e-4)

    # ---- multi-tile exercise: grid (2, 3, 3) with padding on every axis -----
    B2, D2, H2 = 24, 300, 520
    x2 = jax.random.normal(jax.random.PRNGKey(1), (B2, D2), jnp.float32)
    w2d, b2d, w2u, b2u = init_params(jax.random.PRNGKey(2), D2, H2)
    params2 = prepare_params(w2d, b2d, w2u, b2u, tile_h_max=256, tile_k_max=128)
    h2, y2 = mlp_forward(x2, params2, tile_b_max=16, min_batch_tiles=2,
                         h_dtype=jnp.float32)
    jax.block_until_ready((h2, y2))
    h2_ref = jnp.maximum(x2 @ w2d + b2d, 0.0)
    y2_ref = h2_ref @ w2u + b2u
    assert jnp.allclose(h2, h2_ref, atol=1e-4, rtol=1e-4)
    assert jnp.allclose(y2, y2_ref, atol=1e-3, rtol=1e-3)

    print("KERNEL_OK")
</pallas_src>

<mosaic_0001>
module attributes {stable_mosaic.version = 11 : i64} {
  func.func @mlp_kernel(%arg0: i32, %arg1: i32, %arg2: i32, %arg3: memref<8x128xf32, #tpu.memory_space<vmem>>, %arg4: memref<128x128xf32, #tpu.memory_space<vmem>>, %arg5: memref<1x128xf32, #tpu.memory_space<vmem>>, %arg6: memref<1x128xf32, #tpu.memory_space<vmem>>, %arg7: memref<1x1xf32, #tpu.memory_space<vmem>>, %arg8: memref<8x128xbf16, #tpu.memory_space<vmem>>, %arg9: memref<8x1xf32, #tpu.memory_space<vmem>>, %arg10: memref<8x128xf32, #tpu.memory_space<vmem>>) attributes {dimension_semantics = [#tpu.dimension_semantics<parallel>, #tpu.dimension_semantics<arbitrary>, #tpu.dimension_semantics<arbitrary>], iteration_bounds = array<i64: 1, 1, 1>, scalar_prefetch = 0 : i64, scratch_operands = 1 : i64, tpu.core_type = #tpu.core_type<tc>, window_params = [{transform_indices = @transform_0, window_bounds = array<i64: 8, 128>}, {transform_indices = @transform_1, window_bounds = array<i64: 128, 128>}, {transform_indices = @transform_2, window_bounds = array<i64: 1, 128>}, {transform_indices = @transform_3, window_bounds = array<i64: 1, 128>}, {pipeline_mode = #tpu.pipeline_mode<synchronous>, transform_indices = @transform_4, window_bounds = array<i64: 1, 1>}, {transform_indices = @transform_5, window_bounds = array<i64: 8, 128>}, {transform_indices = @transform_6, window_bounds = array<i64: 8, 1>}]} {
    %c0_i32 = arith.constant 0 : i32
    %0 = arith.cmpi eq, %arg2, %c0_i32 : i32
    %1 = arith.extui %0 : i1 to i32
    %c0_i32_0 = arith.constant 0 : i32
    %2 = arith.cmpi ne, %1, %c0_i32_0 : i32
    scf.if %2 {
      %cst_10 = arith.constant 0.000000e+00 : f32
      %12 = vector.broadcast %cst_10 : f32 to vector<8x128xf32>
      %c0_11 = arith.constant 0 : index
      %c0_12 = arith.constant 0 : index
      %13 = vector.load %arg10[%c0_11, %c0_12] : memref<8x128xf32, #tpu.memory_space<vmem>>, vector<8x128xf32>
      tpu.vector_store %arg10[%c0_11, %c0_12], %12 {strides = array<i32>} : memref<8x128xf32, #tpu.memory_space<vmem>>, vector<8x128xf32>,
    } else {
    }
    %c0 = arith.constant 0 : index
    %c0_1 = arith.constant 0 : index
    %3 = vector.load %arg10[%c0, %c0_1] : memref<8x128xf32, #tpu.memory_space<vmem>>, vector<8x128xf32>
    %c0_2 = arith.constant 0 : index
    %c0_3 = arith.constant 0 : index
    %4 = vector.load %arg3[%c0_2, %c0_3] : memref<8x128xf32, #tpu.memory_space<vmem>>, vector<8x128xf32>
    %c0_4 = arith.constant 0 : index
    %c0_5 = arith.constant 0 : index
    %5 = vector.load %arg4[%c0_4, %c0_5] : memref<128x128xf32, #tpu.memory_space<vmem>>, vector<128x128xf32>
    %cst = arith.constant dense<0.000000e+00> : vector<8x128xf32>
    %6 = tpu.matmul %4, %5, %cst {dimension_numbers = #tpu.dot_dimension_numbers<[1], [0], [0], [1], [0, 0, 1, 1], [], []>} : vector<8x128xf32>, vector<128x128xf32>, vector<8x128xf32> -> vector<8x128xf32>
    %7 = arith.addf %3, %6 : vector<8x128xf32>
    %c0_6 = arith.constant 0 : index
    %c0_7 = arith.constant 0 : index
    %8 = vector.load %arg10[%c0_6, %c0_7] : memref<8x128xf32, #tpu.memory_space<vmem>>, vector<8x128xf32>
    tpu.vector_store %arg10[%c0_6, %c0_7], %7 {strides = array<i32>} : memref<8x128xf32, #tpu.memory_space<vmem>>, vector<8x128xf32>,
    %c0_i32_8 = arith.constant 0 : i32
    %9 = arith.cmpi eq, %arg2, %c0_i32_8 : i32
    %10 = arith.extui %9 : i1 to i32
    %c0_i32_9 = arith.constant 0 : i32
    %11 = arith.cmpi ne, %10, %c0_i32_9 : i32
    scf.if %11 {
      %c0_10 = arith.constant 0 : index
      %c0_11 = arith.constant 0 : index
      %12 = vector.load %arg10[%c0_10, %c0_11] : memref<8x128xf32, #tpu.memory_space<vmem>>, vector<8x128xf32>
      %c0_12 = arith.constant 0 : index
      %c0_13 = arith.constant 0 : index
      %13 = vector.load %arg5[%c0_12, %c0_13] : memref<1x128xf32, #tpu.memory_space<vmem>>, vector<1x128xf32>
      %14 = vector.broadcast %13 : vector<1x128xf32> to vector<8x128xf32>
      %15 = arith.addf %12, %14 : vector<8x128xf32>
      %cst_14 = arith.constant 0.000000e+00 : f32
      %16 = vector.broadcast %cst_14 : f32 to vector<8x128xf32>
      %17 = arith.maximumf %15, %16 : vector<8x128xf32>
      %18 = arith.truncf %17 : vector<8x128xf32> to vector<8x128xbf16>
      %c0_15 = arith.constant 0 : index
      %c0_16 = arith.constant 0 : index
      %19 = vector.load %arg8[%c0_15, %c0_16] : memref<8x128xbf16, #tpu.memory_space<vmem>>, vector<8x128xbf16>
      tpu.vector_store %arg8[%c0_15, %c0_16], %18 {strides = array<i32>} : memref<8x128xbf16, #tpu.memory_space<vmem>>, vector<8x128xbf16>,
      %c0_17 = arith.constant 0 : index
      %c0_18 = arith.constant 0 : index
      %20 = vector.load %arg6[%c0_17, %c0_18] : memref<1x128xf32, #tpu.memory_space<vmem>>, vector<1x128xf32>
      %21 = vector.broadcast %20 : vector<1x128xf32> to vector<8x128xf32>
      %22 = arith.mulf %17, %21 : vector<8x128xf32>
      %cst_19 = arith.constant dense<0.000000e+00> : vector<8xf32>
      %23 = vector.multi_reduction <add>, %22, %cst_19 [1] : vector<8x128xf32> to vector<8xf32>
      %24 = vector.shape_cast %23 : vector<8xf32> to vector<8x1xf32>
      %c0_i32_20 = arith.constant 0 : i32
      %25 = arith.cmpi eq, %arg1, %c0_i32_20 : i32
      %26 = arith.extui %25 : i1 to i32
      %c0_i32_21 = arith.constant 0 : i32
      %27 = arith.cmpi ne, %26, %c0_i32_21 : i32
      scf.if %27 {
        %c0_24 = arith.constant 0 : index
        %c0_25 = arith.constant 0 : index
        %31 = vector.load %arg7[%c0_24, %c0_25] : memref<1x1xf32, #tpu.memory_space<vmem>>, vector<1x1xf32>
        %32 = vector.broadcast %31 : vector<1x1xf32> to vector<8x1xf32>
        %33 = arith.addf %32, %24 : vector<8x1xf32>
        %c0_26 = arith.constant 0 : index
        %c0_27 = arith.constant 0 : index
        %34 = vector.load %arg9[%c0_26, %c0_27] : memref<8x1xf32, #tpu.memory_space<vmem>>, vector<8x1xf32>
        tpu.vector_store %arg9[%c0_26, %c0_27], %33 {strides = array<i32>} : memref<8x1xf32, #tpu.memory_space<vmem>>, vector<8x1xf32>,
      } else {
      }
      %c0_i32_22 = arith.constant 0 : i32
      %28 = arith.cmpi sgt, %arg1, %c0_i32_22 : i32
      %29 = arith.extui %28 : i1 to i32
      %c0_i32_23 = arith.constant 0 : i32
      %30 = arith.cmpi ne, %29, %c0_i32_23 : i32
      scf.if %30 {
        %c0_24 = arith.constant 0 : index
        %c0_25 = arith.constant 0 : index
        %31 = vector.load %arg9[%c0_24, %c0_25] : memref<8x1xf32, #tpu.memory_space<vmem>>, vector<8x1xf32>
        %32 = arith.addf %31, %24 : vector<8x1xf32>
        %c0_26 = arith.constant 0 : index
        %c0_27 = arith.constant 0 : index
        %33 = vector.load %arg9[%c0_26, %c0_27] : memref<8x1xf32, #tpu.memory_space<vmem>>, vector<8x1xf32>
        tpu.vector_store %arg9[%c0_26, %c0_27], %32 {strides = array<i32>} : memref<8x1xf32, #tpu.memory_space<vmem>>, vector<8x1xf32>,
      } else {
      }
    } else {
    }
    return
  }
  func.func @transform_0(%arg0: i32, %arg1: i32, %arg2: i32) -> (i32, i32) {
    %c0_i32 = arith.constant 0 : i32
    return %arg0, %arg2 : i32, i32
  }
  func.func @transform_1(%arg0: i32, %arg1: i32, %arg2: i32) -> (i32, i32) {
    %c0_i32 = arith.constant 0 : i32
    return %arg2, %arg1 : i32, i32
  }
  func.func @transform_2(%arg0: i32, %arg1: i32, %arg2: i32) -> (i32, i32) {
    %c0_i32 = arith.constant 0 : i32
    %c0_i32_0 = arith.constant 0 : i32
    return %c0_i32, %arg1 : i32, i32
  }
  func.func @transform_3(%arg0: i32, %arg1: i32, %arg2: i32) -> (i32, i32) {
    %c0_i32 = arith.constant 0 : i32
    %c0_i32_0 = arith.constant 0 : i32
    return %c0_i32, %arg1 : i32, i32
  }
  func.func @transform_4(%arg0: i32, %arg1: i32, %arg2: i32) -> (i32, i32) {
    %c0_i32 = arith.constant 0 : i32
    %c0_i32_0 = arith.constant 0 : i32
    %c0_i32_1 = arith.constant 0 : i32
    return %c0_i32, %c0_i32_0 : i32, i32
  }
  func.func @transform_5(%arg0: i32, %arg1: i32, %arg2: i32) -> (i32, i32) {
    %c0_i32 = arith.constant 0 : i32
    return %arg0, %arg1 : i32, i32
  }
  func.func @transform_6(%arg0: i32, %arg1: i32, %arg2: i32) -> (i32, i32) {
    %c0_i32 = arith.constant 0 : i32
    %c0_i32_0 = arith.constant 0 : i32
    return %arg0, %c0_i32 : i32, i32
  }
}

</mosaic_0001>

<llo_original>
// kernel: tpu_custom_call.1
$region0: #{tpu_custom_call.1}
  #allocation0 [shape = 'u32[]', space=smem, size = 0x4, offset = 0x4, fixed_abs, tag = 'smem constant byte address 0x4 - core index']
  #allocation1 [shape = 'u32[72,128]{1,0:T(1,128)}', space=vmem, size = 0x9000, scoped, tag = 'internal scratch']
  #allocation2 [shape = 'f32[8,128]{1,0:T(8,128)}', space=vmem, size = 0x1000, scoped, tag = 'scratch operand']
  #allocation3 [shape = 'f32[1,1]{1,0:T(1,128)S(1)}', space=vmem, size = 0x200, scoped, tag = 'scoped memory for tpu_custom_call.1']
  %s0 = inlined_call_operand.hbm [shape: f32[8,128], index: 0, kind: input, shape index: {}]
  %s1 = inlined_call_operand.hbm [shape: f32[128,128], index: 1, kind: input, shape index: {}]
  %s2 = inlined_call_operand.vmem [shape: f32[1,128], index: 2, kind: input, shape index: {}]
  %s3 = inlined_call_operand.vmem [shape: f32[1,128], index: 3, kind: input, shape index: {}]
  %s4 = inlined_call_operand.<no memory space> [shape: f32[1,1], index: 4, kind: input, shape index: {}]
  %s5 = inlined_call_operand.hbm [shape: bf16[8,128], index: 5, kind: output, shape index: {0}]
  %s6 = inlined_call_operand.vmem [shape: f32[8,1], index: 6, kind: output, shape index: {1}]
  %7 = xla_tuple %s5, %s6
  %s8 = sld [smem:[#allocation0]]
  $region62: #{tpu_custom_call.1} parent=0
    _
  %s10 = ssub.s32 1, %s8
  %s11 = scalar_select 0, %s10, %s8
  %v12 = vstv %s4
  %13 = vst [vmem:[#allocation3] sm:$0x1] %v12
  $region1: #{tpu_custom_call.1} parent=0
    #allocation4 [shape = 'u8[4096]{0}', space=vmem, size = 0x1000, scoped, tag = 'input window, operand 0, single buffered']
    #allocation5 [shape = 's32[1]{0}', space=sflag, size = 0x4, scoped, tag = 'scoped memory for tpu_custom_call.1']
    #allocation6 [shape = 's32[1]{0}', space=sflag, size = 0x4, scoped, tag = 'scoped memory for tpu_custom_call.1']
    #allocation7 [shape = 'u8[65536]{0}', space=vmem, size = 0x10000, scoped, tag = 'input window, operand 1, single buffered']
    #allocation8 [shape = 's32[1]{0}', space=sflag, size = 0x4, scoped, tag = 'scoped memory for tpu_custom_call.1']
    #allocation9 [shape = 'u8[2048]{0}', space=vmem, size = 0x800, scoped, tag = 'output window, operand 0, single buffered']
    %14 = vsyncpa [#allocation5], 0
    %15 = vsyncpa [#allocation8], 0
    %16 = vsyncpa [#allocation6], 0
    // Predicated region
    $region2: #{tpu_custom_call.1} parent=1 // pred_check
      _
    $region3: #{tpu_custom_call.1} parent=1 // pred_check_branch
      %18 = sbr.rel (0) target = $region5
    $region4: #{tpu_custom_call.1} parent=1 // pred_region
      %20 = vsyncadd [#allocation5], 0
      %s22 = sshll.u32 %s0, 4
      %s23 = int_to_ptr.hbm [resolvable:$true] %s22
      %s24 = sshll.u32 [#allocation4], 4
      %s25 = int_to_ptr.vmem [resolvable:$true] %s24
      %27 = dma.hbm_to_vmem [thread:$0]  %s23, 128, %s25, [#allocation5]
    $region5: #{tpu_custom_call.1} parent=1 // pred_fallthru
      _
    // Predicated region
    $region6: #{tpu_custom_call.1} parent=1 // pred_check
      _
    $region7: #{tpu_custom_call.1} parent=1 // pred_check_branch
      %29 = sbr.rel (0) target = $region9
    $region8: #{tpu_custom_call.1} parent=1 // pred_region
      %31 = vsyncadd [#allocation8], 0
      %s32 = sshll.u32 %s1, 4
      %s33 = int_to_ptr.hbm [resolvable:$true] %s32
      %s34 = sshll.u32 [#allocation7], 4
      %s35 = int_to_ptr.vmem [resolvable:$true] %s34
      %40 = dma.hbm_to_vmem [thread:$0]  %s33, 2048, %s35, [#allocation8], 128, 128, 8
    $region9: #{tpu_custom_call.1} parent=1 // pred_fallthru
      _
    // Predicated region
    $region10: #{tpu_custom_call.1} parent=1 // pred_check
      _
    $region11: #{tpu_custom_call.1} parent=1 // pred_check_branch
      %42 = sbr.rel (0) target = $region13
    $region12: #{tpu_custom_call.1} parent=1 // pred_region
      _
    $region13: #{tpu_custom_call.1} parent=1 // pred_fallthru
      _
    // Predicated region
    $region14: #{tpu_custom_call.1} parent=1 // pred_check
      _
    $region15: #{tpu_custom_call.1} parent=1 // pred_check_branch
      %44 = sbr.rel (0) target = $region17
    $region16: #{tpu_custom_call.1} parent=1 // pred_region
      _
    $region17: #{tpu_custom_call.1} parent=1 // pred_fallthru
      _
    // Predicated region
    $region18: #{tpu_custom_call.1} parent=1 // pred_check
      _
    $region19: #{tpu_custom_call.1} parent=1 // pred_check_branch
      %46 = sbr.rel (0) target = $region21
    $region20: #{tpu_custom_call.1} parent=1 // pred_region
      _
    $region21: #{tpu_custom_call.1} parent=1 // pred_fallthru
      _
    // Predicated region
    $region22: #{tpu_custom_call.1} parent=1 // pred_check
      _
    $region23: #{tpu_custom_call.1} parent=1 // pred_check_branch
      %48 = sbr.rel (0) target = $region25
    $region24: #{tpu_custom_call.1} parent=1 // pred_region
      %50 = dma.done [#allocation5], 128
    $region25: #{tpu_custom_call.1} parent=1 // pred_fallthru
      _
    // Predicated region
    $region26: #{tpu_custom_call.1} parent=1 // pred_check
      _
    $region27: #{tpu_custom_call.1} parent=1 // pred_check_branch
      %52 = sbr.rel (0) target = $region29
    $region28: #{tpu_custom_call.1} parent=1 // pred_region
      %54 = dma.done [#allocation8], 2048
    $region29: #{tpu_custom_call.1} parent=1 // pred_fallthru
      _
    %p55 = scmp.eq.s32.totalorder 0, 0
    // Predicated region
    $region30: #{tpu_custom_call.1} parent=1 // pred_check
      %p56 = pneg %p55
    $region31: #{tpu_custom_call.1} parent=1 // pred_check_branch
      %58 = sbr.rel (%p56) target = $region33
    $region32: #{tpu_custom_call.1} parent=1 // pred_region
      %59 = vst [vmem:[#allocation2] sm:$0xff] 0.0
    $region33: #{tpu_custom_call.1} parent=1 // pred_fallthru
      _
    %v60 = vld [vmem:[#allocation2] sm:$0xff]
    %v61 = vld [vmem:[#allocation4] sm:$0xff]
    %v62 = vld [vmem:[#allocation7] sm:$0xff]
    %v63 = vld [vmem:[#allocation7 + $0x8] sm:$0xff]
    %v64 = vld [vmem:[#allocation7 + $0x10] sm:$0xff]
    %v65 = vld [vmem:[#allocation7 + $0x18] sm:$0xff]
    %v66 = vld [vmem:[#allocation7 + $0x20] sm:$0xff]
    %v67 = vld [vmem:[#allocation7 + $0x28] sm:$0xff]
    %v68 = vld [vmem:[#allocation7 + $0x30] sm:$0xff]
    %v69 = vld [vmem:[#allocation7 + $0x38] sm:$0xff]
    %v70 = vld [vmem:[#allocation7 + $0x40] sm:$0xff]
    %v71 = vld [vmem:[#allocation7 + $0x48] sm:$0xff]
    %v72 = vld [vmem:[#allocation7 + $0x50] sm:$0xff]
    %v73 = vld [vmem:[#allocation7 + $0x58] sm:$0xff]
    %v74 = vld [vmem:[#allocation7 + $0x60] sm:$0xff]
    %v75 = vld [vmem:[#allocation7 + $0x68] sm:$0xff]
    %v76 = vld [vmem:[#allocation7 + $0x70] sm:$0xff]
    %v77 = vld [vmem:[#allocation7 + $0x78] sm:$0xff]
    %78 = vmatpush.msra.mxu0 %v77
    %79 = vmatpush.msra.mxu0 %v76
    %80 = vmatpush.msra.mxu0 %v75
    %81 = vmatpush.msra.mxu0 %v74
    %82 = vmatpush.msra.mxu0 %v73
    %83 = vmatpush.msra.mxu0 %v72
    %84 = vmatpush.msra.mxu0 %v71
    %85 = vmatpush.msra.mxu0 %v70
    %86 = vmatpush.msra.mxu0 %v69
    %87 = vmatpush.msra.mxu0 %v68
    %88 = vmatpush.msra.mxu0 %v67
    %89 = vmatpush.msra.mxu0 %v66
    %90 = vmatpush.msra.mxu0 %v65
    %91 = vmatpush.msra.mxu0 %v64
    %92 = vmatpush.msra.mxu0 %v63
    %93 = vmatpush.msra.mxu0 %v62
    %94 = vmatmul.f32.gmra.mxu0 %v61
    %v95 = vpop.f32.mrf.mxu0
    %v96 = vadd.f32 0.0, %v95
    %97 = vdwg.mxu0
    %v98 = vadd.f32 %v60, %v96
    %99 = vst [vmem:[#allocation2] sm:$0xff] %v98
    // Predicated region
    $region34: #{tpu_custom_call.1} parent=1 // pred_check
      %p100 = pneg %p55
    $region35: #{tpu_custom_call.1} parent=1 // pred_check_branch
      %102 = sbr.rel (%p100) target = $region37
    $region36: #{tpu_custom_call.1} parent=1 // pred_region
      %v103 = vld [vmem:[#allocation2] sm:$0xff]
      %v104 = vld [vmem:[%s2] sm:$0x1]
      %v106 = vperm.slane %v104, 0
      %v108 = vadd.f32 %v103, %v106
      %v109 = vmax.f32 %v108, 0.0
      %v110 = vpack.c.bf16 %v109, %v109
      %111 = vst [vmem:[#allocation9] sm:$0xf] %v110
      %v112 = vld [vmem:[%s3] sm:$0x1]
      %v114 = vperm.slane %v112, 0
      %v116 = vmul.f32 %v109, %v114
      %117 = vadd.xlane.f32.xlu0 %v116
      %v118 = vpop.xlane.xlu0 %117
      %p119 = scmp.eq.s32.totalorder 0, 0
      // Predicated region
      $region38: #{tpu_custom_call.1} parent=36 // pred_check
        %p120 = pneg %p119
      $region39: #{tpu_custom_call.1} parent=36 // pred_check_branch
        %122 = sbr.rel (%p120) target = $region41
      $region40: #{tpu_custom_call.1} parent=36 // pred_region
        %v123 = vld [vmem:[#allocation3] sm:$0x1]
        %v125 = vperm.slane %v123, 0
        %v127 = vadd.f32 %v125, %v118
        %vm128 = vcmask 7168
        %129 = vst.msk [vmem:[%s6] sm:$0xff] %vm128, %v127
      $region41: #{tpu_custom_call.1} parent=36 // pred_fallthru
        _
      %p130 = scmp.gt.s32.totalorder 0, 0
      // Predicated region
      $region42: #{tpu_custom_call.1} parent=36 // pred_check
        %p131 = pneg %p130
      $region43: #{tpu_custom_call.1} parent=36 // pred_check_branch
        %133 = sbr.rel (%p131) target = $region45
      $region44: #{tpu_custom_call.1} parent=36 // pred_region
        %v134 = vld [vmem:[%s6] sm:$0xff]
        %v135 = vadd.f32 %v134, %v118
        %vm136 = vcmask 7168
        %137 = vst.msk [vmem:[%s6] sm:$0xff] %vm136, %v135
      $region45: #{tpu_custom_call.1} parent=36 // pred_fallthru
        _
    $region37: #{tpu_custom_call.1} parent=1 // pred_fallthru
      _
    // Predicated region
    $region46: #{tpu_custom_call.1} parent=1 // pred_check
      _
    $region47: #{tpu_custom_call.1} parent=1 // pred_check_branch
      %139 = sbr.rel (0) target = $region49
    $region48: #{tpu_custom_call.1} parent=1 // pred_region
      %141 = vsyncadd [#allocation6], 0
      %s143 = sshll.u32 [#allocation9], 4
      %s144 = int_to_ptr.vmem [resolvable:$true] %s143
      %s145 = sshll.u32 %s5, 4
      %s146 = int_to_ptr.hbm [resolvable:$true] %s145
      %148 = dma.vmem_to_hbm [thread:$0]  %s144, 64, %s146, [#allocation6]
    $region49: #{tpu_custom_call.1} parent=1 // pred_fallthru
      _
    // Predicated region
    $region50: #{tpu_custom_call.1} parent=1 // pred_check
      _
    $region51: #{tpu_custom_call.1} parent=1 // pred_check_branch
      %150 = sbr.rel (0) target = $region53
    $region52: #{tpu_custom_call.1} parent=1 // pred_region
      _
    $region53: #{tpu_custom_call.1} parent=1 // pred_fallthru
      _
    // Predicated region
    $region54: #{tpu_custom_call.1} parent=1 // pred_check
      _
    $region55: #{tpu_custom_call.1} parent=1 // pred_check_branch
      %152 = sbr.rel (0) target = $region57
    $region56: #{tpu_custom_call.1} parent=1 // pred_region
      %154 = dma.done [#allocation6], 64
    $region57: #{tpu_custom_call.1} parent=1 // pred_fallthru
      _
    // Predicated region
    $region58: #{tpu_custom_call.1} parent=1 // pred_check
      _
    $region59: #{tpu_custom_call.1} parent=1 // pred_check_branch
      %156 = sbr.rel (0) target = $region61
    $region60: #{tpu_custom_call.1} parent=1 // pred_region
      _
    $region61: #{tpu_custom_call.1} parent=1 // pred_fallthru
      _
    %157 = vsyncpa [#allocation5], 1
    %158 = vsyncpa [#allocation8], 1
    %159 = vsyncpa [#allocation6], 1

</llo_original>
